<compile_context>
chip_gen: v7x
topology: tpu7x:2x2x1
jax: 0.10.0
libtpu: 0.0.40
codegen_flags: <defaults>
</compile_context>

<pallas_src>
import math
import functools

import jax
import jax.numpy as jnp
from jax.experimental import pallas as pl
from jax.experimental.pallas import tpu as pltpu


# --------------------------------------------------------------------------- #
# Kernel
# --------------------------------------------------------------------------- #
def _group_cosine_linear_kernel(x_ref, w_ref, rs_ref, o_ref, acc_ref):
    k = pl.program_id(2)

    @pl.when(k == 0)
    def _init():
        acc_ref[...] = jnp.zeros_like(acc_ref)

    # MXU: (TM,TK)·(TN,TK), contracting K on both operands — no transpose.
    acc_ref[...] += jax.lax.dot_general(
        x_ref[...], w_ref[...],
        dimension_numbers=(((1,), (1,)), ((), ())),
        preferred_element_type=jnp.float32,
    )

    @pl.when(k == pl.num_programs(2) - 1)
    def _finalize():
        # (TM,TN) * (TM,1) broadcast; all normalization folded into rs_ref.
        o_ref[...] = (acc_ref[...] * rs_ref[...]).astype(o_ref.dtype)


# --------------------------------------------------------------------------- #
# Tile / VMEM heuristics
# --------------------------------------------------------------------------- #
def _round_up(v, m):
    return ((v + m - 1) // m) * m


def _sublane(dtype):
    bits = jnp.dtype(dtype).itemsize * 8
    if bits >= 32:
        return 8
    if bits == 16:
        return 16
    return 32


def _largest_divisor_tile(dim, unit, cap):
    """Largest t <= cap, multiple of `unit`, dividing `dim` (dim % unit == 0)."""
    t = (min(cap, dim) // unit) * unit
    while t > unit:
        if dim % t == 0:
            return t
        t -= unit
    return unit


def _next_smaller_divisor_tile(dim, unit, current):
    t = current - unit
    while t > unit:
        if dim % t == 0:
            return t
        t -= unit
    return unit


def _vmem_capacity_bytes():
    try:
        info = pltpu.get_tpu_info()
        cap = getattr(info, "vmem_capacity_bytes", None)
        if cap:
            return int(cap)
    except Exception:
        pass
    return 64 << 20  # conservative fallback (v7x-sized); safe on every gen


def _tile_vmem_bytes(tm, tn, tk, in_bytes, out_bytes):
    # double-buffered x, W, row_scale, out tiles + resident f32 accumulator
    return (2 * (tm * tk * in_bytes + tn * tk * in_bytes
                 + tm * tn * out_bytes + tm * 4)
            + tm * tn * 4)


def _auto_tiles(n, out_p128, k_p128, in_bytes, out_bytes, sub, budget):
    tm = min(512, _round_up(n, sub))
    tk = _largest_divisor_tile(k_p128, 128, 2048)
    tn = _largest_divisor_tile(out_p128, 128, 1024)

    # Shrink until the double-buffered tiles fit the per-generation budget.
    while _tile_vmem_bytes(tm, tn, tk, in_bytes, out_bytes) > budget:
        if tk > 512:
            tk = _next_smaller_divisor_tile(k_p128, 128, tk)
        elif tn > 256:
            tn = _next_smaller_divisor_tile(out_p128, 128, tn)
        elif tm > 2 * sub:
            tm = max(sub, _round_up(tm // 2, sub))
        elif tk > 128:
            tk = _next_smaller_divisor_tile(k_p128, 128, tk)
        elif tn > 128:
            tn = _next_smaller_divisor_tile(out_p128, 128, tn)
        else:
            break

    # Megacore (v7x): make sure there are >=2 parallel (i,j) blocks if possible.
    n_p = _round_up(n, tm)
    if (n_p // tm) * (out_p128 // tn) < 2 and tn > 128:
        tn = _next_smaller_divisor_tile(out_p128, 128, tn)

    return tm, tn, tk


# --------------------------------------------------------------------------- #
# Wrapper
# --------------------------------------------------------------------------- #
def group_cosine_linear(x, weight, sigma=None, *, tm=None, tn=None, tk=None):
    """x: (N, in_features), weight: (out_features, in_features), sigma: (1,) or None."""
    n, in_f = x.shape
    out_f, in_f_w = weight.shape
    assert in_f == in_f_w, "in_features mismatch"

    in_dtype = x.dtype
    sub = _sublane(in_dtype)
    in_bytes = jnp.dtype(in_dtype).itemsize
    out_bytes = in_bytes

    out_p128 = _round_up(out_f, 128)
    k_p128 = _round_up(in_f, 128)

    cap = _vmem_capacity_bytes()
    tile_budget = int(cap * 0.40)          # tiles + acc stay under ~40% of VMEM
    vmem_limit = int(cap * 0.60)           # raise past v5e's 16 MiB scoped default

    a_tm, a_tn, a_tk = _auto_tiles(n, out_p128, k_p128, in_bytes, out_bytes,
                                   sub, tile_budget)
    tm = a_tm if tm is None else _round_up(tm, sub)
    tn = a_tn if tn is None else _round_up(tn, 128)
    tk = a_tk if tk is None else _round_up(tk, 128)

    n_p = _round_up(n, tm)
    out_p = _round_up(out_f, tn)
    k_p = _round_up(in_f, tk)

    # --- Pad only when needed (auto tiles are divisors of the 128-padded dims,
    #     so already-aligned weights incur NO padded-W HBM copy).
    x_p = x if (n_p == n and k_p == in_f) else jnp.pad(
        x, ((0, n_p - n), (0, k_p - in_f)))
    w_p = weight if (out_p == out_f and k_p == in_f) else jnp.pad(
        weight, ((0, out_p - out_f), (0, k_p - in_f)))

    # --- Hoisted scaling (single pass over W; zero padding adds 0 to the sum).
    w32 = w_p.astype(jnp.float32)
    mean_sq = jnp.sum(w32 * w32) / jnp.float32(out_f)
    if sigma is None:
        sig = jnp.float32(1.0)
    else:
        sig = jnp.asarray(sigma, jnp.float32).reshape(())
    w_scale = sig * jax.lax.rsqrt(mean_sq)

    # --- Per-row inverse norm of x, folded together with the weight scale.
    x32 = x.astype(jnp.float32)
    ssq = jnp.sum(x32 * x32, axis=1, keepdims=True)             # (N, 1)
    row_scale = jax.lax.rsqrt(jnp.maximum(ssq, 1e-24)) * w_scale
    row_scale_p = row_scale if n_p == n else jnp.pad(
        row_scale, ((0, n_p - n), (0, 0)))                      # (n_p, 1) f32

    grid = (n_p // tm, out_p // tn, k_p // tk)

    out_padded = pl.pallas_call(
        _group_cosine_linear_kernel,
        out_shape=jax.ShapeDtypeStruct((n_p, out_p), in_dtype),
        grid_spec=pltpu.PrefetchScalarGridSpec(
            num_scalar_prefetch=0,
            grid=grid,
            in_specs=[
                pl.BlockSpec((tm, tk), lambda i, j, k: (i, k)),   # x
                pl.BlockSpec((tn, tk), lambda i, j, k: (j, k)),   # weight
                pl.BlockSpec((tm, 1), lambda i, j, k: (i, 0)),    # row scale
            ],
            out_specs=pl.BlockSpec((tm, tn), lambda i, j, k: (i, j)),
            scratch_shapes=[
                pltpu.VMEM((tm, tn), jnp.float32),                # accumulator
            ],
        ),
        compiler_params=pltpu.CompilerParams(
            dimension_semantics=("parallel", "parallel", "arbitrary"),
            vmem_limit_bytes=vmem_limit),
    )(x_p, w_p, row_scale_p)

    return out_padded[:n, :out_f]


# --------------------------------------------------------------------------- #
# Pure-JAX reference
# --------------------------------------------------------------------------- #
def _reference(x, weight, sigma):
    w32 = weight.astype(jnp.float32)
    w_norm_sq = jnp.sum(w32 * w32, axis=1, keepdims=True)
    w_scaled = w32 / jnp.sqrt(jnp.mean(w_norm_sq))
    x32 = x.astype(jnp.float32)
    x_n = x32 / jnp.maximum(jnp.linalg.norm(x32, axis=1, keepdims=True), 1e-12)
    out = x_n @ w_scaled.T
    if sigma is not None:
        out = jnp.asarray(sigma, jnp.float32).reshape(())[()] * out
    return out.astype(x.dtype)


if __name__ == "__main__":
    key = jax.random.PRNGKey(0)
    k_x, k_w, k_x2, k_w2, k_x3, k_w3 = jax.random.split(key, 6)

    # Jit the whole wrapper so the pad / mean_sq / row-norm passes fuse.
    gcl = jax.jit(group_cosine_linear, static_argnames=("tm", "tn", "tk"))

    # --- Case 1: module defaults (weight ~ U(-stdv, stdv), sigma = 1), f32.
    batch, in_features, out_features = 8, 32, 16
    stdv = 1.0 / math.sqrt(in_features)
    weight = jax.random.uniform(
        k_w, (out_features, in_features), jnp.float32, minval=-stdv, maxval=stdv)
    sigma = jnp.ones((1,), jnp.float32)
    x = jax.random.normal(k_x, (batch, in_features), jnp.float32)

    out = jax.block_until_ready(gcl(x, weight, sigma))
    ref = _reference(x, weight, sigma)
    assert out.shape == (batch, out_features)
    assert jnp.allclose(out, ref, atol=1e-5, rtol=1e-5), "mismatch vs reference (case 1)"

    # --- Case 2: ragged shapes + explicit small tiles to exercise the
    #     multi-step (i, j, k) grid, accumulator init/finalize, and padding.
    b2, in2, o2 = 10, 300, 200
    stdv2 = 1.0 / math.sqrt(in2)
    w2 = jax.random.uniform(k_w2, (o2, in2), jnp.float32, minval=-stdv2, maxval=stdv2)
    x2 = jax.random.normal(k_x2, (b2, in2), jnp.float32)
    sigma2 = jnp.full((1,), 2.5, jnp.float32)

    out2 = jax.block_until_ready(gcl(x2, w2, sigma2, tm=8, tn=128, tk=128))
    ref2 = _reference(x2, w2, sigma2)
    assert out2.shape == (b2, o2)
    assert jnp.allclose(out2, ref2, atol=1e-5, rtol=1e-4), "mismatch vs reference (case 2)"

    # --- Case 3: bf16 operands (sublane tile = 16, megacore tn-split path).
    b3, in3, o3 = 24, 256, 384
    stdv3 = 1.0 / math.sqrt(in3)
    w3 = jax.random.uniform(
        k_w3, (o3, in3), jnp.float32, minval=-stdv3, maxval=stdv3).astype(jnp.bfloat16)
    x3 = jax.random.normal(k_x3, (b3, in3), jnp.float32).astype(jnp.bfloat16)
    sigma3 = jnp.ones((1,), jnp.float32)

    out3 = jax.block_until_ready(gcl(x3, w3, sigma3))
    ref3 = _reference(x3, w3, sigma3)
    assert out3.shape == (b3, o3)
    assert jnp.allclose(out3.astype(jnp.float32), ref3.astype(jnp.float32),
                        atol=5e-2, rtol=5e-2), "mismatch vs reference (case 3)"

    print("KERNEL_OK")
</pallas_src>

<mosaic_0001>
module attributes {stable_mosaic.version = 11 : i64} {
  func.func @_group_cosine_linear_kernel(%arg0: i32, %arg1: i32, %arg2: i32, %arg3: memref<8x128xf32, #tpu.memory_space<vmem>>, %arg4: memref<128x128xf32, #tpu.memory_space<vmem>>, %arg5: memref<8x1xf32, #tpu.memory_space<vmem>>, %arg6: memref<8x128xf32, #tpu.memory_space<vmem>>, %arg7: memref<8x128xf32, #tpu.memory_space<vmem>>) attributes {dimension_semantics = [#tpu.dimension_semantics<parallel>, #tpu.dimension_semantics<parallel>, #tpu.dimension_semantics<arbitrary>], iteration_bounds = array<i64: 1, 1, 1>, scalar_prefetch = 0 : i64, scratch_operands = 1 : i64, tpu.core_type = #tpu.core_type<tc>, window_params = [{transform_indices = @transform_0, window_bounds = array<i64: 8, 128>}, {transform_indices = @transform_1, window_bounds = array<i64: 128, 128>}, {transform_indices = @transform_2, window_bounds = array<i64: 8, 1>}, {transform_indices = @transform_3, window_bounds = array<i64: 8, 128>}]} {
    %c0_i32 = arith.constant 0 : i32
    %0 = arith.cmpi eq, %arg2, %c0_i32 : i32
    %1 = arith.extui %0 : i1 to i32
    %c0_i32_0 = arith.constant 0 : i32
    %2 = arith.cmpi ne, %1, %c0_i32_0 : i32
    scf.if %2 {
      %cst_10 = arith.constant 0.000000e+00 : f32
      %12 = vector.broadcast %cst_10 : f32 to vector<8x128xf32>
      %c0_11 = arith.constant 0 : index
      %c0_12 = arith.constant 0 : index
      %13 = vector.load %arg7[%c0_11, %c0_12] : memref<8x128xf32, #tpu.memory_space<vmem>>, vector<8x128xf32>
      tpu.vector_store %arg7[%c0_11, %c0_12], %12 {strides = array<i32>} : memref<8x128xf32, #tpu.memory_space<vmem>>, vector<8x128xf32>,
    } else {
    }
    %c0 = arith.constant 0 : index
    %c0_1 = arith.constant 0 : index
    %3 = vector.load %arg7[%c0, %c0_1] : memref<8x128xf32, #tpu.memory_space<vmem>>, vector<8x128xf32>
    %c0_2 = arith.constant 0 : index
    %c0_3 = arith.constant 0 : index
    %4 = vector.load %arg3[%c0_2, %c0_3] : memref<8x128xf32, #tpu.memory_space<vmem>>, vector<8x128xf32>
    %c0_4 = arith.constant 0 : index
    %c0_5 = arith.constant 0 : index
    %5 = vector.load %arg4[%c0_4, %c0_5] : memref<128x128xf32, #tpu.memory_space<vmem>>, vector<128x128xf32>
    %cst = arith.constant dense<0.000000e+00> : vector<8x128xf32>
    %6 = tpu.matmul %4, %5, %cst {dimension_numbers = #tpu.dot_dimension_numbers<[1], [1], [0], [0], [0, 0, 1, 0], [], []>} : vector<8x128xf32>, vector<128x128xf32>, vector<8x128xf32> -> vector<8x128xf32>
    %7 = arith.addf %3, %6 : vector<8x128xf32>
    %c0_6 = arith.constant 0 : index
    %c0_7 = arith.constant 0 : index
    %8 = vector.load %arg7[%c0_6, %c0_7] : memref<8x128xf32, #tpu.memory_space<vmem>>, vector<8x128xf32>
    tpu.vector_store %arg7[%c0_6, %c0_7], %7 {strides = array<i32>} : memref<8x128xf32, #tpu.memory_space<vmem>>, vector<8x128xf32>,
    %c0_i32_8 = arith.constant 0 : i32
    %9 = arith.cmpi eq, %arg2, %c0_i32_8 : i32
    %10 = arith.extui %9 : i1 to i32
    %c0_i32_9 = arith.constant 0 : i32
    %11 = arith.cmpi ne, %10, %c0_i32_9 : i32
    scf.if %11 {
      %c0_10 = arith.constant 0 : index
      %c0_11 = arith.constant 0 : index
      %12 = vector.load %arg7[%c0_10, %c0_11] : memref<8x128xf32, #tpu.memory_space<vmem>>, vector<8x128xf32>
      %c0_12 = arith.constant 0 : index
      %c0_13 = arith.constant 0 : index
      %13 = vector.load %arg5[%c0_12, %c0_13] : memref<8x1xf32, #tpu.memory_space<vmem>>, vector<8x1xf32>
      %14 = vector.broadcast %13 : vector<8x1xf32> to vector<8x128xf32>
      %15 = arith.mulf %12, %14 : vector<8x128xf32>
      %c0_14 = arith.constant 0 : index
      %c0_15 = arith.constant 0 : index
      %16 = vector.load %arg6[%c0_14, %c0_15] : memref<8x128xf32, #tpu.memory_space<vmem>>, vector<8x128xf32>
      tpu.vector_store %arg6[%c0_14, %c0_15], %15 {strides = array<i32>} : memref<8x128xf32, #tpu.memory_space<vmem>>, vector<8x128xf32>,
    } else {
    }
    return
  }
  func.func @transform_0(%arg0: i32, %arg1: i32, %arg2: i32) -> (i32, i32) {
    %c0_i32 = arith.constant 0 : i32
    return %arg0, %arg2 : i32, i32
  }
  func.func @transform_1(%arg0: i32, %arg1: i32, %arg2: i32) -> (i32, i32) {
    %c0_i32 = arith.constant 0 : i32
    return %arg1, %arg2 : i32, i32
  }
  func.func @transform_2(%arg0: i32, %arg1: i32, %arg2: i32) -> (i32, i32) {
    %c0_i32 = arith.constant 0 : i32
    %c0_i32_0 = arith.constant 0 : i32
    return %arg0, %c0_i32 : i32, i32
  }
  func.func @transform_3(%arg0: i32, %arg1: i32, %arg2: i32) -> (i32, i32) {
    %c0_i32 = arith.constant 0 : i32
    return %arg0, %arg1 : i32, i32
  }
}

</mosaic_0001>

<llo_original>
// kernel: group_cosine_linear.1
$region0: #{group_cosine_linear.1}
  #allocation0 [shape = 'u32[]', space=smem, size = 0x4, offset = 0x4, fixed_abs, tag = 'smem constant byte address 0x4 - core index']
  #allocation1 [shape = 'u32[144,128]{1,0:T(1,128)}', space=vmem, size = 0x12000, scoped, tag = 'internal scratch']
  #allocation2 [shape = 'f32[8,128]{1,0:T(8,128)}', space=vmem, size = 0x1000, scoped, tag = 'scratch operand']
  %s0 = inlined_call_operand.vmem [shape: f32[8,128], index: 0, kind: input, shape index: {}]
  %s1 = inlined_call_operand.vmem [shape: f32[128,128], index: 1, kind: input, shape index: {}]
  %s2 = inlined_call_operand.vmem [shape: f32[8,1], index: 2, kind: input, shape index: {}]
  %s3 = inlined_call_operand.hbm [shape: f32[8,128], index: 3, kind: output, shape index: {}]
  %s4 = sld [smem:[#allocation0]]
  $region30: #{group_cosine_linear.1} parent=0
    _
  %s6 = ssub.s32 1, %s4
  %s7 = scalar_select 0, %s6, %s4
  $region1: #{group_cosine_linear.1} parent=0
    #allocation3 [shape = 'u8[4096]{0}', space=vmem, size = 0x1000, scoped, tag = 'output window, operand 0, single buffered']
    #allocation4 [shape = 's32[1]{0}', space=sflag, size = 0x4, scoped, tag = 'scoped memory for group_cosine_linear.1']
    %8 = vsyncpa [#allocation4], 0
    // Predicated region
    $region2: #{group_cosine_linear.1} parent=1 // pred_check
      _
    $region3: #{group_cosine_linear.1} parent=1 // pred_check_branch
      %10 = sbr.rel (0) target = $region5
    $region4: #{group_cosine_linear.1} parent=1 // pred_region
      _
    $region5: #{group_cosine_linear.1} parent=1 // pred_fallthru
      _
    // Predicated region
    $region6: #{group_cosine_linear.1} parent=1 // pred_check
      _
    $region7: #{group_cosine_linear.1} parent=1 // pred_check_branch
      %12 = sbr.rel (0) target = $region9
    $region8: #{group_cosine_linear.1} parent=1 // pred_region
      _
    $region9: #{group_cosine_linear.1} parent=1 // pred_fallthru
      _
    // Predicated region
    $region10: #{group_cosine_linear.1} parent=1 // pred_check
      _
    $region11: #{group_cosine_linear.1} parent=1 // pred_check_branch
      %14 = sbr.rel (0) target = $region13
    $region12: #{group_cosine_linear.1} parent=1 // pred_region
      _
    $region13: #{group_cosine_linear.1} parent=1 // pred_fallthru
      _
    %p15 = scmp.eq.s32.totalorder 0, 0
    // Predicated region
    $region14: #{group_cosine_linear.1} parent=1 // pred_check
      %p16 = pneg %p15
    $region15: #{group_cosine_linear.1} parent=1 // pred_check_branch
      %18 = sbr.rel (%p16) target = $region17
    $region16: #{group_cosine_linear.1} parent=1 // pred_region
      %19 = vst [vmem:[#allocation2] sm:$0xff] 0.0
    $region17: #{group_cosine_linear.1} parent=1 // pred_fallthru
      _
    %v20 = vld [vmem:[#allocation2] sm:$0xff]
    %v21 = vld [vmem:[%s0] sm:$0xff]
    %v22 = vld [vmem:[%s1] sm:$0xff]
    %v23 = vld [vmem:[%s1 + $0x8] sm:$0xff]
    %v24 = vld [vmem:[%s1 + $0x10] sm:$0xff]
    %v25 = vld [vmem:[%s1 + $0x18] sm:$0xff]
    %v26 = vld [vmem:[%s1 + $0x20] sm:$0xff]
    %v27 = vld [vmem:[%s1 + $0x28] sm:$0xff]
    %v28 = vld [vmem:[%s1 + $0x30] sm:$0xff]
    %v29 = vld [vmem:[%s1 + $0x38] sm:$0xff]
    %v30 = vld [vmem:[%s1 + $0x40] sm:$0xff]
    %v31 = vld [vmem:[%s1 + $0x48] sm:$0xff]
    %v32 = vld [vmem:[%s1 + $0x50] sm:$0xff]
    %v33 = vld [vmem:[%s1 + $0x58] sm:$0xff]
    %v34 = vld [vmem:[%s1 + $0x60] sm:$0xff]
    %v35 = vld [vmem:[%s1 + $0x68] sm:$0xff]
    %v36 = vld [vmem:[%s1 + $0x70] sm:$0xff]
    %v37 = vld [vmem:[%s1 + $0x78] sm:$0xff]
    %38 = vmatprep.subr.mxu0 0.0
    %39 = vmatpush1.xpose.msra.mxu0 %v22
    %40 = vmatprep.subr.mxu0 0.0
    %41 = vmatpush1.xpose.msra.mxu0 %v23
    %42 = vmatprep.subr.mxu0 0.0
    %43 = vmatpush1.xpose.msra.mxu0 %v24
    %44 = vmatprep.subr.mxu0 0.0
    %45 = vmatpush1.xpose.msra.mxu0 %v25
    %46 = vmatprep.subr.mxu0 0.0
    %47 = vmatpush1.xpose.msra.mxu0 %v26
    %48 = vmatprep.subr.mxu0 0.0
    %49 = vmatpush1.xpose.msra.mxu0 %v27
    %50 = vmatprep.subr.mxu0 0.0
    %51 = vmatpush1.xpose.msra.mxu0 %v28
    %52 = vmatprep.subr.mxu0 0.0
    %53 = vmatpush1.xpose.msra.mxu0 %v29
    %54 = vmatprep.subr.mxu0 0.0
    %55 = vmatpush1.xpose.msra.mxu0 %v30
    %56 = vmatprep.subr.mxu0 0.0
    %57 = vmatpush1.xpose.msra.mxu0 %v31
    %58 = vmatprep.subr.mxu0 0.0
    %59 = vmatpush1.xpose.msra.mxu0 %v32
    %60 = vmatprep.subr.mxu0 0.0
    %61 = vmatpush1.xpose.msra.mxu0 %v33
    %62 = vmatprep.subr.mxu0 0.0
    %63 = vmatpush1.xpose.msra.mxu0 %v34
    %64 = vmatprep.subr.mxu0 0.0
    %65 = vmatpush1.xpose.msra.mxu0 %v35
    %66 = vmatprep.subr.mxu0 0.0
    %67 = vmatpush1.xpose.msra.mxu0 %v36
    %68 = vmatprep.subr.mxu0 0.0
    %69 = vmatpush1.xpose.msra.mxu0 %v37
    %70 = vmatprep.subr.mxu0 0.0
    %71 = vmatpush1.xpose.msra.mxu0 0.0
    %72 = vmatprep.subr.mxu0 0.0
    %73 = vmatpush1.xpose.msra.mxu0 0.0
    %74 = vmatprep.subr.mxu0 0.0
    %75 = vmatpush1.xpose.msra.mxu0 0.0
    %76 = vmatprep.subr.mxu0 0.0
    %77 = vmatpush1.xpose.msra.mxu0 0.0
    %78 = vmatprep.subr.mxu0 0.0
    %79 = vmatpush1.xpose.msra.mxu0 0.0
    %80 = vmatprep.subr.mxu0 0.0
    %81 = vmatpush1.xpose.msra.mxu0 0.0
    %82 = vmatprep.subr.mxu0 0.0
    %83 = vmatpush1.xpose.msra.mxu0 0.0
    %84 = vmatprep.subr.mxu0 0.0
    %85 = vmatpush1.xpose.msra.mxu0 0.0
    %86 = vmatprep.subr.mxu0 0.0
    %87 = vmatpush1.xpose.msra.mxu0 0.0
    %88 = vmatprep.subr.mxu0 0.0
    %89 = vmatpush1.xpose.msra.mxu0 0.0
    %90 = vmatprep.subr.mxu0 0.0
    %91 = vmatpush1.xpose.msra.mxu0 0.0
    %92 = vmatprep.subr.mxu0 0.0
    %93 = vmatpush1.xpose.msra.mxu0 0.0
    %94 = vmatprep.subr.mxu0 0.0
    %95 = vmatpush1.xpose.msra.mxu0 0.0
    %96 = vmatprep.subr.mxu0 0.0
    %97 = vmatpush1.xpose.msra.mxu0 0.0
    %98 = vmatprep.subr.mxu0 0.0
    %99 = vmatpush1.xpose.msra.mxu0 0.0
    %100 = vmatprep.subr.mxu0 0.0
    %101 = vmatpush1.xpose.msra.mxu0 0.0
    %102 = vmatprep.mubr.f32.mxu0 0.0
    %103 = vmatmul.mubr.f32.gmra.mrb[0].mxu0 %v21
    %v104 = vpop.f32.mrb[0].mxu0
    %v105 = vadd.f32 0.0, %v104
    %v106 = vpop.f32.mrb[0].mxu0
    %107 = vdwg.mxu0
    %v108 = vadd.f32 %v20, %v105
    %109 = vst [vmem:[#allocation2] sm:$0xff] %v108
    // Predicated region
    $region18: #{group_cosine_linear.1} parent=1 // pred_check
      %p110 = pneg %p15
    $region19: #{group_cosine_linear.1} parent=1 // pred_check_branch
      %112 = sbr.rel (%p110) target = $region21
    $region20: #{group_cosine_linear.1} parent=1 // pred_region
      %v113 = vld [vmem:[#allocation2] sm:$0xff]
      %v114 = vld [vmem:[%s2] sm:$0xff]
      %116 = vset.pattern.permute.xlu0 0
      %117 = vperm.xlu0 %116, %v114
      %v118 = vpop.permute.xlu0 %117
      %v120 = vmul.f32 %v113, %v118
      %121 = vst [vmem:[#allocation3] sm:$0xff] %v120
    $region21: #{group_cosine_linear.1} parent=1 // pred_fallthru
      _
    // Predicated region
    $region22: #{group_cosine_linear.1} parent=1 // pred_check
      _
    $region23: #{group_cosine_linear.1} parent=1 // pred_check_branch
      %123 = sbr.rel (0) target = $region25
    $region24: #{group_cosine_linear.1} parent=1 // pred_region
      %s125 = ssub.s32 128, 128
      %126 = vsyncadd [#allocation4], %s125
      %s128 = sshll.u32 [#allocation3], 4
      %s129 = int_to_ptr.vmem [resolvable:$true] %s128
      %131 = dma.vmem_to_hbm [thread:$0]  %s129, 128, %s3, [#allocation4]
    $region25: #{group_cosine_linear.1} parent=1 // pred_fallthru
      _
    // Predicated region
    $region26: #{group_cosine_linear.1} parent=1 // pred_check
      _
    $region27: #{group_cosine_linear.1} parent=1 // pred_check_branch
      %133 = sbr.rel (0) target = $region29
    $region28: #{group_cosine_linear.1} parent=1 // pred_region
      %134 = dma.done [#allocation4], 128
    $region29: #{group_cosine_linear.1} parent=1 // pred_fallthru
      _
    %135 = vsyncpa [#allocation4], 1

</llo_original>
